<compile_context>
chip_gen: v5e
topology: v5e:2x2
jax: 0.10.0
libtpu: 0.0.40
codegen_flags: <defaults>
</compile_context>

<pallas_src>
import math
import functools

import jax
import jax.numpy as jnp
from jax.experimental import pallas as pl
from jax.experimental.pallas import tpu as pltpu  # noqa: F401  (TPU backend)

EPS = 1e-5  # nn.BatchNorm1d and nn.LayerNorm default eps


def value_network_kernel(apply_bn,
                         x_ref,
                         w1_ref, b1_ref, g1_ref, be1_ref,
                         w2_ref, b2_ref, g2_ref, be2_ref,
                         wattn_ref, battn_ref,
                         lng_ref, lnb_ref,
                         wval_ref, bval_ref,
                         out_ref):
    x = x_ref[...]

    # ---- fc1 (+ optional BatchNorm1d with batch statistics) + relu ----
    h = jnp.dot(x, w1_ref[...], preferred_element_type=jnp.float32) + b1_ref[...]
    if apply_bn:  # static (batch size is static), matches `if x.size(0) > 1`
        mu = jnp.mean(h, axis=0, keepdims=True)
        var = jnp.mean((h - mu) ** 2, axis=0, keepdims=True)   # biased var (PyTorch BN)
        h = (h - mu) * jax.lax.rsqrt(var + EPS) * g1_ref[...] + be1_ref[...]
    h = jnp.maximum(h, 0.0)

    # ---- fc2 (+ optional BatchNorm1d) + relu ----
    h = jnp.dot(h, w2_ref[...], preferred_element_type=jnp.float32) + b2_ref[...]
    if apply_bn:
        mu = jnp.mean(h, axis=0, keepdims=True)
        var = jnp.mean((h - mu) ** 2, axis=0, keepdims=True)
        h = (h - mu) * jax.lax.rsqrt(var + EPS) * g2_ref[...] + be2_ref[...]
    h = jnp.maximum(h, 0.0)

    # ---- AttentionModule (seq_length == 1) ----
    # softmax over one key position == 1, dropout is identity at inference, so
    # context == value projection; value->output Linears are pre-fused into a
    # single (128,128) weight + bias (exact, no nonlinearity between them).
    attn_out = (jnp.dot(h, wattn_ref[...], preferred_element_type=jnp.float32)
                + battn_ref[...])

    # residual + LayerNorm over the feature axis (128)
    y = h + attn_out
    mu = jnp.mean(y, axis=-1, keepdims=True)
    var = jnp.mean((y - mu) ** 2, axis=-1, keepdims=True)       # biased var (PyTorch LN)
    y = (y - mu) * jax.lax.rsqrt(var + EPS) * lng_ref[...] + lnb_ref[...]

    # ---- value head (out_features == 1) ----
    # VPU multiply + XLU lane reduction instead of an MXU matmul padded to a
    # full 128/256-lane output tile.
    out_ref[...] = (jnp.sum(y * wval_ref[...], axis=-1, keepdims=True)
                    + bval_ref[...])


def init_linear(key, in_f, out_f):
    """PyTorch nn.Linear default init; returns (W^T: (in,out), b: (1,out))."""
    kw, kb = jax.random.split(key)
    bound = 1.0 / math.sqrt(in_f)
    w = jax.random.uniform(kw, (out_f, in_f), jnp.float32, -bound, bound)
    b = jax.random.uniform(kb, (out_f,), jnp.float32, -bound, bound)
    return w.T, b.reshape(1, out_f)


def init_value_network_params(key, state_size):
    keys = jax.random.split(key, 5)
    w1, b1 = init_linear(keys[0], state_size, 256)
    w2, b2 = init_linear(keys[1], 256, 128)
    wv, bv = init_linear(keys[2], 128, 128)     # attention value Linear
    wo, bo = init_linear(keys[3], 128, 128)     # attention output Linear
    wval, bval = init_linear(keys[4], 128, 1)   # wval: (128,1), bval: (1,1)

    # Exact fusion of the two attention Linears (no nonlinearity in between):
    #   (h @ wv + bv) @ wo + bo == h @ (wv @ wo) + (bv @ wo + bo)
    w_attn = wv @ wo            # (128, 128)
    b_attn = bv @ wo + bo       # (1, 128)

    return dict(
        w1=w1, b1=b1,
        g1=jnp.ones((1, 256), jnp.float32), be1=jnp.zeros((1, 256), jnp.float32),
        w2=w2, b2=b2,
        g2=jnp.ones((1, 128), jnp.float32), be2=jnp.zeros((1, 128), jnp.float32),
        w_attn=w_attn, b_attn=b_attn,
        lng=jnp.ones((1, 128), jnp.float32), lnb=jnp.zeros((1, 128), jnp.float32),
        wval_row=wval.T,        # (1, 128) row for the VPU-reduce value head
        bval=bval,              # (1, 1)
    )


def value_network_forward(x, params):
    # The q/k cancellation + dropout-as-identity simplifications are only valid
    # for the 2-D input path (seq_length == 1) at inference, which is exactly
    # what ValueNetwork.forward does.
    assert x.ndim == 2, "ValueNetwork kernel expects 2-D (batch, state_size) input"

    B = x.shape[0]
    apply_bn = B > 1  # static batch-size check, same as `if x.size(0) > 1`

    args = (x,
            params["w1"], params["b1"], params["g1"], params["be1"],
            params["w2"], params["b2"], params["g2"], params["be2"],
            params["w_attn"], params["b_attn"],
            params["lng"], params["lnb"],
            params["wval_row"], params["bval"])

    # Tiny problem (<300 KiB of operands): no grid, no BlockSpecs -- every
    # operand is a whole-array VMEM block and the kernel runs once, with no
    # pipeline per-step overhead.
    return pl.pallas_call(
        functools.partial(value_network_kernel, apply_bn),
        out_shape=jax.ShapeDtypeStruct((B, 1), jnp.float32),
    )(*args)


if __name__ == "__main__":
    key = jax.random.PRNGKey(0)
    k_param, k_x = jax.random.split(key)

    state_size = 32
    batch = 4

    params = init_value_network_params(k_param, state_size)
    x = jax.random.normal(k_x, (batch, state_size), jnp.float32)

    out = value_network_forward(x, params)
    out = jax.block_until_ready(out)

    assert out.shape == (batch, 1) and out.dtype == jnp.float32
    print("KERNEL_OK")
</pallas_src>

<mosaic_0001>
module attributes {stable_mosaic.version = 11 : i64} {
  func.func @value_network_kernel(%arg0: memref<4x32xf32, #tpu.memory_space<vmem>>, %arg1: memref<32x256xf32, #tpu.memory_space<vmem>>, %arg2: memref<1x256xf32, #tpu.memory_space<vmem>>, %arg3: memref<1x256xf32, #tpu.memory_space<vmem>>, %arg4: memref<1x256xf32, #tpu.memory_space<vmem>>, %arg5: memref<256x128xf32, #tpu.memory_space<vmem>>, %arg6: memref<1x128xf32, #tpu.memory_space<vmem>>, %arg7: memref<1x128xf32, #tpu.memory_space<vmem>>, %arg8: memref<1x128xf32, #tpu.memory_space<vmem>>, %arg9: memref<128x128xf32, #tpu.memory_space<vmem>>, %arg10: memref<1x128xf32, #tpu.memory_space<vmem>>, %arg11: memref<1x128xf32, #tpu.memory_space<vmem>>, %arg12: memref<1x128xf32, #tpu.memory_space<vmem>>, %arg13: memref<1x128xf32, #tpu.memory_space<vmem>>, %arg14: memref<1x1xf32, #tpu.memory_space<vmem>>, %arg15: memref<4x1xf32, #tpu.memory_space<vmem>>) attributes {dimension_semantics = [], scalar_prefetch = 0 : i64, scratch_operands = 0 : i64, tpu.core_type = #tpu.core_type<tc>} {
    %c0 = arith.constant 0 : index
    %c0_0 = arith.constant 0 : index
    %0 = vector.load %arg0[%c0, %c0_0] : memref<4x32xf32, #tpu.memory_space<vmem>>, vector<4x32xf32>
    %c0_1 = arith.constant 0 : index
    %c0_2 = arith.constant 0 : index
    %1 = vector.load %arg1[%c0_1, %c0_2] : memref<32x256xf32, #tpu.memory_space<vmem>>, vector<32x256xf32>
    %cst = arith.constant dense<0.000000e+00> : vector<4x256xf32>
    %2 = tpu.matmul %0, %1, %cst {dimension_numbers = #tpu.dot_dimension_numbers<[1], [0], [0], [1], [0, 0, 1, 1], [], []>} : vector<4x32xf32>, vector<32x256xf32>, vector<4x256xf32> -> vector<4x256xf32>
    %c0_3 = arith.constant 0 : index
    %c0_4 = arith.constant 0 : index
    %3 = vector.load %arg2[%c0_3, %c0_4] : memref<1x256xf32, #tpu.memory_space<vmem>>, vector<1x256xf32>
    %4 = vector.broadcast %3 : vector<1x256xf32> to vector<4x256xf32>
    %5 = arith.addf %2, %4 : vector<4x256xf32>
    %cst_5 = arith.constant dense<0.000000e+00> : vector<256xf32>
    %6 = vector.multi_reduction <add>, %5, %cst_5 [0] : vector<4x256xf32> to vector<256xf32>
    %7 = vector.shape_cast %6 : vector<256xf32> to vector<1x256xf32>
    %cst_6 = arith.constant 4.000000e+00 : f32
    %8 = vector.broadcast %cst_6 : f32 to vector<1x256xf32>
    %9 = arith.divf %7, %8 : vector<1x256xf32>
    %10 = vector.broadcast %9 : vector<1x256xf32> to vector<4x256xf32>
    %11 = arith.subf %5, %10 : vector<4x256xf32>
    %12 = arith.mulf %11, %11 : vector<4x256xf32>
    %cst_7 = arith.constant dense<0.000000e+00> : vector<256xf32>
    %13 = vector.multi_reduction <add>, %12, %cst_7 [0] : vector<4x256xf32> to vector<256xf32>
    %14 = vector.shape_cast %13 : vector<256xf32> to vector<1x256xf32>
    %cst_8 = arith.constant 4.000000e+00 : f32
    %15 = vector.broadcast %cst_8 : f32 to vector<1x256xf32>
    %16 = arith.divf %14, %15 : vector<1x256xf32>
    %17 = vector.broadcast %9 : vector<1x256xf32> to vector<4x256xf32>
    %18 = arith.subf %5, %17 : vector<4x256xf32>
    %cst_9 = arith.constant 9.99999974E-6 : f32
    %19 = vector.broadcast %cst_9 : f32 to vector<1x256xf32>
    %20 = arith.addf %16, %19 : vector<1x256xf32>
    %21 = math.rsqrt %20 : vector<1x256xf32>
    %22 = vector.broadcast %21 : vector<1x256xf32> to vector<4x256xf32>
    %23 = arith.mulf %18, %22 : vector<4x256xf32>
    %c0_10 = arith.constant 0 : index
    %c0_11 = arith.constant 0 : index
    %24 = vector.load %arg3[%c0_10, %c0_11] : memref<1x256xf32, #tpu.memory_space<vmem>>, vector<1x256xf32>
    %25 = vector.broadcast %24 : vector<1x256xf32> to vector<4x256xf32>
    %26 = arith.mulf %23, %25 : vector<4x256xf32>
    %c0_12 = arith.constant 0 : index
    %c0_13 = arith.constant 0 : index
    %27 = vector.load %arg4[%c0_12, %c0_13] : memref<1x256xf32, #tpu.memory_space<vmem>>, vector<1x256xf32>
    %28 = vector.broadcast %27 : vector<1x256xf32> to vector<4x256xf32>
    %29 = arith.addf %26, %28 : vector<4x256xf32>
    %cst_14 = arith.constant 0.000000e+00 : f32
    %30 = vector.broadcast %cst_14 : f32 to vector<4x256xf32>
    %31 = arith.maximumf %29, %30 : vector<4x256xf32>
    %c0_15 = arith.constant 0 : index
    %c0_16 = arith.constant 0 : index
    %32 = vector.load %arg5[%c0_15, %c0_16] : memref<256x128xf32, #tpu.memory_space<vmem>>, vector<256x128xf32>
    %cst_17 = arith.constant dense<0.000000e+00> : vector<4x128xf32>
    %33 = tpu.matmul %31, %32, %cst_17 {dimension_numbers = #tpu.dot_dimension_numbers<[1], [0], [0], [1], [0, 0, 1, 1], [], []>} : vector<4x256xf32>, vector<256x128xf32>, vector<4x128xf32> -> vector<4x128xf32>
    %c0_18 = arith.constant 0 : index
    %c0_19 = arith.constant 0 : index
    %34 = vector.load %arg6[%c0_18, %c0_19] : memref<1x128xf32, #tpu.memory_space<vmem>>, vector<1x128xf32>
    %35 = vector.broadcast %34 : vector<1x128xf32> to vector<4x128xf32>
    %36 = arith.addf %33, %35 : vector<4x128xf32>
    %cst_20 = arith.constant dense<0.000000e+00> : vector<128xf32>
    %37 = vector.multi_reduction <add>, %36, %cst_20 [0] : vector<4x128xf32> to vector<128xf32>
    %38 = vector.shape_cast %37 : vector<128xf32> to vector<1x128xf32>
    %cst_21 = arith.constant 4.000000e+00 : f32
    %39 = vector.broadcast %cst_21 : f32 to vector<1x128xf32>
    %40 = arith.divf %38, %39 : vector<1x128xf32>
    %41 = vector.broadcast %40 : vector<1x128xf32> to vector<4x128xf32>
    %42 = arith.subf %36, %41 : vector<4x128xf32>
    %43 = arith.mulf %42, %42 : vector<4x128xf32>
    %cst_22 = arith.constant dense<0.000000e+00> : vector<128xf32>
    %44 = vector.multi_reduction <add>, %43, %cst_22 [0] : vector<4x128xf32> to vector<128xf32>
    %45 = vector.shape_cast %44 : vector<128xf32> to vector<1x128xf32>
    %cst_23 = arith.constant 4.000000e+00 : f32
    %46 = vector.broadcast %cst_23 : f32 to vector<1x128xf32>
    %47 = arith.divf %45, %46 : vector<1x128xf32>
    %48 = vector.broadcast %40 : vector<1x128xf32> to vector<4x128xf32>
    %49 = arith.subf %36, %48 : vector<4x128xf32>
    %cst_24 = arith.constant 9.99999974E-6 : f32
    %50 = vector.broadcast %cst_24 : f32 to vector<1x128xf32>
    %51 = arith.addf %47, %50 : vector<1x128xf32>
    %52 = math.rsqrt %51 : vector<1x128xf32>
    %53 = vector.broadcast %52 : vector<1x128xf32> to vector<4x128xf32>
    %54 = arith.mulf %49, %53 : vector<4x128xf32>
    %c0_25 = arith.constant 0 : index
    %c0_26 = arith.constant 0 : index
    %55 = vector.load %arg7[%c0_25, %c0_26] : memref<1x128xf32, #tpu.memory_space<vmem>>, vector<1x128xf32>
    %56 = vector.broadcast %55 : vector<1x128xf32> to vector<4x128xf32>
    %57 = arith.mulf %54, %56 : vector<4x128xf32>
    %c0_27 = arith.constant 0 : index
    %c0_28 = arith.constant 0 : index
    %58 = vector.load %arg8[%c0_27, %c0_28] : memref<1x128xf32, #tpu.memory_space<vmem>>, vector<1x128xf32>
    %59 = vector.broadcast %58 : vector<1x128xf32> to vector<4x128xf32>
    %60 = arith.addf %57, %59 : vector<4x128xf32>
    %cst_29 = arith.constant 0.000000e+00 : f32
    %61 = vector.broadcast %cst_29 : f32 to vector<4x128xf32>
    %62 = arith.maximumf %60, %61 : vector<4x128xf32>
    %c0_30 = arith.constant 0 : index
    %c0_31 = arith.constant 0 : index
    %63 = vector.load %arg9[%c0_30, %c0_31] : memref<128x128xf32, #tpu.memory_space<vmem>>, vector<128x128xf32>
    %cst_32 = arith.constant dense<0.000000e+00> : vector<4x128xf32>
    %64 = tpu.matmul %62, %63, %cst_32 {dimension_numbers = #tpu.dot_dimension_numbers<[1], [0], [0], [1], [0, 0, 1, 1], [], []>} : vector<4x128xf32>, vector<128x128xf32>, vector<4x128xf32> -> vector<4x128xf32>
    %c0_33 = arith.constant 0 : index
    %c0_34 = arith.constant 0 : index
    %65 = vector.load %arg10[%c0_33, %c0_34] : memref<1x128xf32, #tpu.memory_space<vmem>>, vector<1x128xf32>
    %66 = vector.broadcast %65 : vector<1x128xf32> to vector<4x128xf32>
    %67 = arith.addf %64, %66 : vector<4x128xf32>
    %68 = arith.addf %62, %67 : vector<4x128xf32>
    %cst_35 = arith.constant dense<0.000000e+00> : vector<4xf32>
    %69 = vector.multi_reduction <add>, %68, %cst_35 [1] : vector<4x128xf32> to vector<4xf32>
    %70 = vector.shape_cast %69 : vector<4xf32> to vector<4x1xf32>
    %cst_36 = arith.constant 1.280000e+02 : f32
    %71 = vector.broadcast %cst_36 : f32 to vector<4x1xf32>
    %72 = arith.divf %70, %71 : vector<4x1xf32>
    %73 = vector.broadcast %72 : vector<4x1xf32> to vector<4x128xf32>
    %74 = arith.subf %68, %73 : vector<4x128xf32>
    %75 = arith.mulf %74, %74 : vector<4x128xf32>
    %cst_37 = arith.constant dense<0.000000e+00> : vector<4xf32>
    %76 = vector.multi_reduction <add>, %75, %cst_37 [1] : vector<4x128xf32> to vector<4xf32>
    %77 = vector.shape_cast %76 : vector<4xf32> to vector<4x1xf32>
    %cst_38 = arith.constant 1.280000e+02 : f32
    %78 = vector.broadcast %cst_38 : f32 to vector<4x1xf32>
    %79 = arith.divf %77, %78 : vector<4x1xf32>
    %80 = vector.broadcast %72 : vector<4x1xf32> to vector<4x128xf32>
    %81 = arith.subf %68, %80 : vector<4x128xf32>
    %cst_39 = arith.constant 9.99999974E-6 : f32
    %82 = vector.broadcast %cst_39 : f32 to vector<4x1xf32>
    %83 = arith.addf %79, %82 : vector<4x1xf32>
    %84 = math.rsqrt %83 : vector<4x1xf32>
    %85 = vector.broadcast %84 : vector<4x1xf32> to vector<4x128xf32>
    %86 = arith.mulf %81, %85 : vector<4x128xf32>
    %c0_40 = arith.constant 0 : index
    %c0_41 = arith.constant 0 : index
    %87 = vector.load %arg11[%c0_40, %c0_41] : memref<1x128xf32, #tpu.memory_space<vmem>>, vector<1x128xf32>
    %88 = vector.broadcast %87 : vector<1x128xf32> to vector<4x128xf32>
    %89 = arith.mulf %86, %88 : vector<4x128xf32>
    %c0_42 = arith.constant 0 : index
    %c0_43 = arith.constant 0 : index
    %90 = vector.load %arg12[%c0_42, %c0_43] : memref<1x128xf32, #tpu.memory_space<vmem>>, vector<1x128xf32>
    %91 = vector.broadcast %90 : vector<1x128xf32> to vector<4x128xf32>
    %92 = arith.addf %89, %91 : vector<4x128xf32>
    %c0_44 = arith.constant 0 : index
    %c0_45 = arith.constant 0 : index
    %93 = vector.load %arg13[%c0_44, %c0_45] : memref<1x128xf32, #tpu.memory_space<vmem>>, vector<1x128xf32>
    %94 = vector.broadcast %93 : vector<1x128xf32> to vector<4x128xf32>
    %95 = arith.mulf %92, %94 : vector<4x128xf32>
    %cst_46 = arith.constant dense<0.000000e+00> : vector<4xf32>
    %96 = vector.multi_reduction <add>, %95, %cst_46 [1] : vector<4x128xf32> to vector<4xf32>
    %97 = vector.shape_cast %96 : vector<4xf32> to vector<4x1xf32>
    %c0_47 = arith.constant 0 : index
    %c0_48 = arith.constant 0 : index
    %98 = vector.load %arg14[%c0_47, %c0_48] : memref<1x1xf32, #tpu.memory_space<vmem>>, vector<1x1xf32>
    %99 = vector.broadcast %98 : vector<1x1xf32> to vector<4x1xf32>
    %100 = arith.addf %97, %99 : vector<4x1xf32>
    %c0_49 = arith.constant 0 : index
    %c0_50 = arith.constant 0 : index
    %101 = vector.load %arg15[%c0_49, %c0_50] : memref<4x1xf32, #tpu.memory_space<vmem>>, vector<4x1xf32>
    tpu.vector_store %arg15[%c0_49, %c0_50], %100 {strides = array<i32>} : memref<4x1xf32, #tpu.memory_space<vmem>>, vector<4x1xf32>,
    return
  }
}

</mosaic_0001>

<llo_original>
// kernel: tpu_custom_call.1
$region0: #{tpu_custom_call.1}
  #allocation0 [shape = 'u32[]', space=smem, size = 0x4, offset = 0x4, fixed_abs, tag = 'smem constant byte address 0x4 - core index']
  #allocation1 [shape = 'u32[72,128]{1,0:T(1,128)}', space=vmem, size = 0x9000, scoped, tag = 'internal scratch']
  #allocation2 [shape = 'f32[1,1]{1,0:T(1,128)S(1)}', space=vmem, size = 0x200, scoped, tag = 'scoped memory for tpu_custom_call.1']
  %s0 = inlined_call_operand.hbm [shape: f32[4,32], index: 0, kind: input, shape index: {}]
  %s1 = inlined_call_operand.hbm [shape: f32[32,256], index: 1, kind: input, shape index: {}]
  %s2 = inlined_call_operand.vmem [shape: f32[1,256], index: 2, kind: input, shape index: {}]
  %s3 = inlined_call_operand.vmem [shape: f32[1,256], index: 3, kind: input, shape index: {}]
  %s4 = inlined_call_operand.hbm [shape: f32[1,256], index: 4, kind: input, shape index: {}]
  %s5 = inlined_call_operand.hbm [shape: f32[256,128], index: 5, kind: input, shape index: {}]
  %s6 = inlined_call_operand.vmem [shape: f32[1,128], index: 6, kind: input, shape index: {}]
  %s7 = inlined_call_operand.vmem [shape: f32[1,128], index: 7, kind: input, shape index: {}]
  %s8 = inlined_call_operand.vmem [shape: f32[1,128], index: 8, kind: input, shape index: {}]
  %s9 = inlined_call_operand.hbm [shape: f32[128,128], index: 9, kind: input, shape index: {}]
  %s10 = inlined_call_operand.vmem [shape: f32[1,128], index: 10, kind: input, shape index: {}]
  %s11 = inlined_call_operand.vmem [shape: f32[1,128], index: 11, kind: input, shape index: {}]
  %s12 = inlined_call_operand.vmem [shape: f32[1,128], index: 12, kind: input, shape index: {}]
  %s13 = inlined_call_operand.vmem [shape: f32[1,128], index: 13, kind: input, shape index: {}]
  %s14 = inlined_call_operand.<no memory space> [shape: f32[1,1], index: 14, kind: input, shape index: {}]
  %s15 = inlined_call_operand.vmem [shape: f32[4,1], index: 15, kind: output, shape index: {}]
  %s16 = sld [smem:[#allocation0]]
  $region90: #{tpu_custom_call.1} parent=0
    _
  %s18 = ssub.s32 1, %s16
  %s19 = scalar_select 0, %s18, %s16
  %v20 = vstv %s14
  %21 = vst [vmem:[#allocation2] sm:$0x1] %v20
  $region1: #{tpu_custom_call.1} parent=0
    #allocation3 [shape = 'u8[2048]{0}', space=vmem, size = 0x800, scoped, tag = 'input window, operand 0, single buffered']
    #allocation4 [shape = 's32[1]{0}', space=sflag, size = 0x4, scoped, tag = 'scoped memory for tpu_custom_call.1']
    #allocation5 [shape = 'u8[32768]{0}', space=vmem, size = 0x8000, scoped, tag = 'input window, operand 1, single buffered']
    #allocation6 [shape = 's32[1]{0}', space=sflag, size = 0x4, scoped, tag = 'scoped memory for tpu_custom_call.1']
    #allocation7 [shape = 'u8[1024]{0}', space=vmem, size = 0x400, scoped, tag = 'input window, operand 4, single buffered']
    #allocation8 [shape = 'u8[131072]{0}', space=vmem, size = 0x20000, scoped, tag = 'input window, operand 5, single buffered']
    #allocation9 [shape = 's32[1]{0}', space=sflag, size = 0x4, scoped, tag = 'scoped memory for tpu_custom_call.1']
    #allocation10 [shape = 'u8[65536]{0}', space=vmem, size = 0x10000, scoped, tag = 'input window, operand 9, single buffered']
    %22 = vsyncpa [#allocation4], 0
    %23 = vsyncpa [#allocation6], 0
    %24 = vsyncpa [#allocation9], 0
    // Predicated region
    $region2: #{tpu_custom_call.1} parent=1 // pred_check
      _
    $region3: #{tpu_custom_call.1} parent=1 // pred_check_branch
      %26 = sbr.rel (0) target = $region5
    $region4: #{tpu_custom_call.1} parent=1 // pred_region
      %28 = vsyncadd [#allocation4], 0
      %s30 = sshll.u32 %s0, 4
      %s31 = int_to_ptr.hbm [resolvable:$true] %s30
      %s32 = sshll.u32 [#allocation3], 4
      %s33 = int_to_ptr.vmem [resolvable:$true] %s32
      %35 = dma.hbm_to_vmem [thread:$0]  %s31, 64, %s33, [#allocation4]
    $region5: #{tpu_custom_call.1} parent=1 // pred_fallthru
      _
    // Predicated region
    $region6: #{tpu_custom_call.1} parent=1 // pred_check
      _
    $region7: #{tpu_custom_call.1} parent=1 // pred_check_branch
      %37 = sbr.rel (0) target = $region9
    $region8: #{tpu_custom_call.1} parent=1 // pred_region
      %39 = vsyncadd [#allocation6], 0
      %s40 = sshll.u32 %s1, 4
      %s41 = int_to_ptr.hbm [resolvable:$true] %s40
      %s42 = sshll.u32 [#allocation5], 4
      %s43 = int_to_ptr.vmem [resolvable:$true] %s42
      %48 = dma.hbm_to_vmem [thread:$0]  %s41, 1024, %s43, [#allocation6], 256, 256, 16
    $region9: #{tpu_custom_call.1} parent=1 // pred_fallthru
      _
    // Predicated region
    $region10: #{tpu_custom_call.1} parent=1 // pred_check
      _
    $region11: #{tpu_custom_call.1} parent=1 // pred_check_branch
      %50 = sbr.rel (0) target = $region13
    $region12: #{tpu_custom_call.1} parent=1 // pred_region
      _
    $region13: #{tpu_custom_call.1} parent=1 // pred_fallthru
      _
    // Predicated region
    $region14: #{tpu_custom_call.1} parent=1 // pred_check
      _
    $region15: #{tpu_custom_call.1} parent=1 // pred_check_branch
      %52 = sbr.rel (0) target = $region17
    $region16: #{tpu_custom_call.1} parent=1 // pred_region
      _
    $region17: #{tpu_custom_call.1} parent=1 // pred_fallthru
      _
    // Predicated region
    $region18: #{tpu_custom_call.1} parent=1 // pred_check
      _
    $region19: #{tpu_custom_call.1} parent=1 // pred_check_branch
      %54 = sbr.rel (0) target = $region21
    $region20: #{tpu_custom_call.1} parent=1 // pred_region
      %56 = vsyncadd [#allocation6], 0
      %s58 = sshll.u32 %s4, 4
      %s59 = int_to_ptr.hbm [resolvable:$true] %s58
      %s60 = sshll.u32 [#allocation7], 4
      %s61 = int_to_ptr.vmem [resolvable:$true] %s60
      %63 = dma.hbm_to_vmem [thread:$0]  %s59, 32, %s61, [#allocation6]
    $region21: #{tpu_custom_call.1} parent=1 // pred_fallthru
      _
    // Predicated region
    $region22: #{tpu_custom_call.1} parent=1 // pred_check
      _
    $region23: #{tpu_custom_call.1} parent=1 // pred_check_branch
      %65 = sbr.rel (0) target = $region25
    $region24: #{tpu_custom_call.1} parent=1 // pred_region
      %67 = vsyncadd [#allocation9], 0
      %s68 = sshll.u32 %s5, 4
      %s69 = int_to_ptr.hbm [resolvable:$true] %s68
      %s70 = sshll.u32 [#allocation8], 4
      %s71 = int_to_ptr.vmem [resolvable:$true] %s70
      %76 = dma.hbm_to_vmem [thread:$0]  %s69, 4096, %s71, [#allocation9], 128, 128, 8
    $region25: #{tpu_custom_call.1} parent=1 // pred_fallthru
      _
    // Predicated region
    $region26: #{tpu_custom_call.1} parent=1 // pred_check
      _
    $region27: #{tpu_custom_call.1} parent=1 // pred_check_branch
      %78 = sbr.rel (0) target = $region29
    $region28: #{tpu_custom_call.1} parent=1 // pred_region
      _
    $region29: #{tpu_custom_call.1} parent=1 // pred_fallthru
      _
    // Predicated region
    $region30: #{tpu_custom_call.1} parent=1 // pred_check
      _
    $region31: #{tpu_custom_call.1} parent=1 // pred_check_branch
      %80 = sbr.rel (0) target = $region33
    $region32: #{tpu_custom_call.1} parent=1 // pred_region
      _
    $region33: #{tpu_custom_call.1} parent=1 // pred_fallthru
      _
    // Predicated region
    $region34: #{tpu_custom_call.1} parent=1 // pred_check
      _
    $region35: #{tpu_custom_call.1} parent=1 // pred_check_branch
      %82 = sbr.rel (0) target = $region37
    $region36: #{tpu_custom_call.1} parent=1 // pred_region
      _
    $region37: #{tpu_custom_call.1} parent=1 // pred_fallthru
      _
    // Predicated region
    $region38: #{tpu_custom_call.1} parent=1 // pred_check
      _
    $region39: #{tpu_custom_call.1} parent=1 // pred_check_branch
      %84 = sbr.rel (0) target = $region41
    $region40: #{tpu_custom_call.1} parent=1 // pred_region
      %86 = vsyncadd [#allocation9], 0
      %s87 = sshll.u32 %s9, 4
      %s88 = int_to_ptr.hbm [resolvable:$true] %s87
      %s89 = sshll.u32 [#allocation10], 4
      %s90 = int_to_ptr.vmem [resolvable:$true] %s89
      %95 = dma.hbm_to_vmem [thread:$0]  %s88, 2048, %s90, [#allocation9], 128, 128, 8
    $region41: #{tpu_custom_call.1} parent=1 // pred_fallthru
      _
    // Predicated region
    $region42: #{tpu_custom_call.1} parent=1 // pred_check
      _
    $region43: #{tpu_custom_call.1} parent=1 // pred_check_branch
      %97 = sbr.rel (0) target = $region45
    $region44: #{tpu_custom_call.1} parent=1 // pred_region
      _
    $region45: #{tpu_custom_call.1} parent=1 // pred_fallthru
      _
    // Predicated region
    $region46: #{tpu_custom_call.1} parent=1 // pred_check
      _
    $region47: #{tpu_custom_call.1} parent=1 // pred_check_branch
      %99 = sbr.rel (0) target = $region49
    $region48: #{tpu_custom_call.1} parent=1 // pred_region
      _
    $region49: #{tpu_custom_call.1} parent=1 // pred_fallthru
      _
    // Predicated region
    $region50: #{tpu_custom_call.1} parent=1 // pred_check
      _
    $region51: #{tpu_custom_call.1} parent=1 // pred_check_branch
      %101 = sbr.rel (0) target = $region53
    $region52: #{tpu_custom_call.1} parent=1 // pred_region
      _
    $region53: #{tpu_custom_call.1} parent=1 // pred_fallthru
      _
    // Predicated region
    $region54: #{tpu_custom_call.1} parent=1 // pred_check
      _
    $region55: #{tpu_custom_call.1} parent=1 // pred_check_branch
      %103 = sbr.rel (0) target = $region57
    $region56: #{tpu_custom_call.1} parent=1 // pred_region
      _
    $region57: #{tpu_custom_call.1} parent=1 // pred_fallthru
      _
    // Predicated region
    $region58: #{tpu_custom_call.1} parent=1 // pred_check
      _
    $region59: #{tpu_custom_call.1} parent=1 // pred_check_branch
      %105 = sbr.rel (0) target = $region61
    $region60: #{tpu_custom_call.1} parent=1 // pred_region
      _
    $region61: #{tpu_custom_call.1} parent=1 // pred_fallthru
      _
    // Predicated region
    $region62: #{tpu_custom_call.1} parent=1 // pred_check
      _
    $region63: #{tpu_custom_call.1} parent=1 // pred_check_branch
      %107 = sbr.rel (0) target = $region65
    $region64: #{tpu_custom_call.1} parent=1 // pred_region
      %109 = dma.done [#allocation4], 64
    $region65: #{tpu_custom_call.1} parent=1 // pred_fallthru
      _
    // Predicated region
    $region66: #{tpu_custom_call.1} parent=1 // pred_check
      _
    $region67: #{tpu_custom_call.1} parent=1 // pred_check_branch
      %111 = sbr.rel (0) target = $region69
    $region68: #{tpu_custom_call.1} parent=1 // pred_region
      %113 = dma.done [#allocation6], 1024
    $region69: #{tpu_custom_call.1} parent=1 // pred_fallthru
      _
    // Predicated region
    $region70: #{tpu_custom_call.1} parent=1 // pred_check
      _
    $region71: #{tpu_custom_call.1} parent=1 // pred_check_branch
      %115 = sbr.rel (0) target = $region73
    $region72: #{tpu_custom_call.1} parent=1 // pred_region
      %117 = dma.done [#allocation6], 32
    $region73: #{tpu_custom_call.1} parent=1 // pred_fallthru
      _
    // Predicated region
    $region74: #{tpu_custom_call.1} parent=1 // pred_check
      _
    $region75: #{tpu_custom_call.1} parent=1 // pred_check_branch
      %119 = sbr.rel (0) target = $region77
    $region76: #{tpu_custom_call.1} parent=1 // pred_region
      %121 = dma.done [#allocation9], 4096
    $region77: #{tpu_custom_call.1} parent=1 // pred_fallthru
      _
    // Predicated region
    $region78: #{tpu_custom_call.1} parent=1 // pred_check
      _
    $region79: #{tpu_custom_call.1} parent=1 // pred_check_branch
      %123 = sbr.rel (0) target = $region81
    $region80: #{tpu_custom_call.1} parent=1 // pred_region
      %125 = dma.done [#allocation9], 2048
    $region81: #{tpu_custom_call.1} parent=1 // pred_fallthru
      _
    %v126 = vld [vmem:[#allocation3] sm:$0xf]
    %v127 = vld [vmem:[#allocation5] sm:$0xff]
    %v128 = vld [vmem:[#allocation5 + $0x8] sm:$0xff]
    %v129 = vld [vmem:[#allocation5 + $0x10] sm:$0xff]
    %v130 = vld [vmem:[#allocation5 + $0x18] sm:$0xff]
    %v131 = vld [vmem:[#allocation5 + $0x20] sm:$0xff]
    %v132 = vld [vmem:[#allocation5 + $0x28] sm:$0xff]
    %v133 = vld [vmem:[#allocation5 + $0x30] sm:$0xff]
    %v134 = vld [vmem:[#allocation5 + $0x38] sm:$0xff]
    %v135 = vld [vmem:[%s2] sm:$0x3]
    %v137 = vperm.slane %v135, 0
    %v138 = vperm.slane %v135, 1
    %vm141 = vcmask 261120
    %v143 = vsel %vm141, %v126, 0
    %145 = vmatpush.msra.mxu0 0.0
    %146 = vmatpush.msra.mxu0 0.0
    %147 = vmatpush.msra.mxu0 0.0
    %148 = vmatpush.msra.mxu0 0.0
    %149 = vmatpush.msra.mxu0 0.0
    %150 = vmatpush.msra.mxu0 0.0
    %151 = vmatpush.msra.mxu0 0.0
    %152 = vmatpush.msra.mxu0 0.0
    %153 = vmatpush.msra.mxu0 0.0
    %154 = vmatpush.msra.mxu0 0.0
    %155 = vmatpush.msra.mxu0 0.0
    %156 = vmatpush.msra.mxu0 0.0
    %157 = vmatpush.msra.mxu0 %v133
    %158 = vmatpush.msra.mxu0 %v131
    %159 = vmatpush.msra.mxu0 %v129
    %160 = vmatpush.msra.mxu0 %v127
    %161 = vmatmul.f32.gmra.mxu0 %v143
    %v162 = vpop.f32.mrf.mxu0
    %v163 = vadd.f32 %v137, %v162
    %164 = vdwg.mxu0
    %165 = vmatpush.msra.mxu0 0.0
    %166 = vmatpush.msra.mxu0 0.0
    %167 = vmatpush.msra.mxu0 0.0
    %168 = vmatpush.msra.mxu0 0.0
    %169 = vmatpush.msra.mxu0 0.0
    %170 = vmatpush.msra.mxu0 0.0
    %171 = vmatpush.msra.mxu0 0.0
    %172 = vmatpush.msra.mxu0 0.0
    %173 = vmatpush.msra.mxu0 0.0
    %174 = vmatpush.msra.mxu0 0.0
    %175 = vmatpush.msra.mxu0 0.0
    %176 = vmatpush.msra.mxu0 0.0
    %177 = vmatpush.msra.mxu0 %v134
    %178 = vmatpush.msra.mxu0 %v132
    %179 = vmatpush.msra.mxu0 %v130
    %180 = vmatpush.msra.mxu0 %v128
    %181 = vmatmul.f32.gmra.mxu0 %v143
    %v182 = vpop.f32.mrf.mxu0
    %v183 = vadd.f32 %v138, %v182
    %184 = vdwg.mxu0
    %vm185 = vcmask 1043456
    %v186 = vsel %vm185, %v163, 0.0
    %v187 = vrot.slane %v186, 4
    %v188 = vadd.f32 %v186, %v187
    %v189 = vrot.slane %v188, 2
    %v190 = vadd.f32 %v188, %v189
    %v191 = vrot.slane %v190, 1
    %v192 = vadd.f32 %v190, %v191
    %v193 = vsel %vm185, %v183, 0.0
    %v194 = vrot.slane %v193, 4
    %v195 = vadd.f32 %v193, %v194
    %v196 = vrot.slane %v195, 2
    %v197 = vadd.f32 %v195, %v196
    %v198 = vrot.slane %v197, 1
    %v199 = vadd.f32 %v197, %v198
    %v200 = vrcp.pop 4.0
    %v201 = vmul.f32 4.0, %v200
    %v202 = vsub.f32 1.0, %v201
    %v203 = vmul.f32 %v200, %v202
    %v204 = vadd.f32 %v200, %v203
    %vm205 = vweird.f32 %v200
    %v206 = vsel %vm205, %v200, %v204
    %v207 = vmul.f32 %v192, %v206
    %v208 = vmul.f32 %v199, %v206
    %v209 = vsub.f32 %v163, %v207
    %v210 = vsub.f32 %v183, %v208
    %v211 = vmul.f32 %v209, %v209
    %v212 = vmul.f32 %v210, %v210
    %v213 = vsel %vm185, %v211, 0.0
    %v214 = vrot.slane %v213, 4
    %v215 = vadd.f32 %v213, %v214
    %v216 = vrot.slane %v215, 2
    %v217 = vadd.f32 %v215, %v216
    %v218 = vrot.slane %v217, 1
    %v219 = vadd.f32 %v217, %v218
    %v220 = vsel %vm185, %v212, 0.0
    %v221 = vrot.slane %v220, 4
    %v222 = vadd.f32 %v220, %v221
    %v223 = vrot.slane %v222, 2
    %v224 = vadd.f32 %v222, %v223
    %v225 = vrot.slane %v224, 1
    %v226 = vadd.f32 %v224, %v225
    %v227 = vmul.f32 %v219, %v206
    %v228 = vmul.f32 %v226, %v206
    %v229 = vadd.f32 %v227, 1e-05
    %v230 = vadd.f32 %v228, 1e-05
    %v231 = vrsqrt.pop %v229
    %v232 = vmul.f32 %v231, %v229
    %v233 = vmul.f32 %v232, %v231
    %v234 = vmul.f32 0.5, %v233
    %v235 = vsub.f32 1.5, %v234
    %v236 = vmul.f32 %v231, %v235
    %vm237 = vweird.f32 %v229
    %vm238 = vweird.f32 %v231
    %vm239 = vmor %vm237, %vm238
    %v240 = vsel %vm239, %v231, %v236
    %v241 = vrsqrt.pop %v230
    %v242 = vmul.f32 %v241, %v230
    %v243 = vmul.f32 %v242, %v241
    %v244 = vmul.f32 0.5, %v243
    %v245 = vsub.f32 1.5, %v244
    %v246 = vmul.f32 %v241, %v245
    %vm247 = vweird.f32 %v230
    %vm248 = vweird.f32 %v241
    %vm249 = vmor %vm247, %vm248
    %v250 = vsel %vm249, %v241, %v246
    %v251 = vmul.f32 %v209, %v240
    %v252 = vmul.f32 %v210, %v250
    %v253 = vld [vmem:[%s3] sm:$0x3]
    %v255 = vperm.slane %v253, 0
    %v256 = vperm.slane %v253, 1
    %v259 = vmul.f32 %v251, %v255
    %v260 = vmul.f32 %v252, %v256
    %v261 = vld [vmem:[#allocation7] sm:$0x3]
    %v263 = vperm.slane %v261, 0
    %v264 = vperm.slane %v261, 1
    %v267 = vadd.f32 %v259, %v263
    %v268 = vadd.f32 %v260, %v264
    %v269 = vmax.f32 %v267, 0.0
    %v270 = vmax.f32 %v268, 0.0
    %v271 = vld [vmem:[#allocation8] sm:$0xff]
    %v272 = vld [vmem:[#allocation8 + $0x8] sm:$0xff]
    %v273 = vld [vmem:[#allocation8 + $0x10] sm:$0xff]
    %v274 = vld [vmem:[#allocation8 + $0x18] sm:$0xff]
    %v275 = vld [vmem:[#allocation8 + $0x20] sm:$0xff]
    %v276 = vld [vmem:[#allocation8 + $0x28] sm:$0xff]
    %v277 = vld [vmem:[#allocation8 + $0x30] sm:$0xff]
    %v278 = vld [vmem:[#allocation8 + $0x38] sm:$0xff]
    %v279 = vld [vmem:[#allocation8 + $0x40] sm:$0xff]
    %v280 = vld [vmem:[#allocation8 + $0x48] sm:$0xff]
    %v281 = vld [vmem:[#allocation8 + $0x50] sm:$0xff]
    %v282 = vld [vmem:[#allocation8 + $0x58] sm:$0xff]
    %v283 = vld [vmem:[#allocation8 + $0x60] sm:$0xff]
    %v284 = vld [vmem:[#allocation8 + $0x68] sm:$0xff]
    %v285 = vld [vmem:[#allocation8 + $0x70] sm:$0xff]
    %v286 = vld [vmem:[#allocation8 + $0x78] sm:$0xff]
    %v287 = vld [vmem:[#allocation8 + $0x80] sm:$0xff]
    %v288 = vld [vmem:[#allocation8 + $0x88] sm:$0xff]
    %v289 = vld [vmem:[#allocation8 + $0x90] sm:$0xff]
    %v290 = vld [vmem:[#allocation8 + $0x98] sm:$0xff]
    %v291 = vld [vmem:[#allocation8 + $0xa0] sm:$0xff]
    %v292 = vld [vmem:[#allocation8 + $0xa8] sm:$0xff]
    %v293 = vld [vmem:[#allocation8 + $0xb0] sm:$0xff]
    %v294 = vld [vmem:[#allocation8 + $0xb8] sm:$0xff]
    %v295 = vld [vmem:[#allocation8 + $0xc0] sm:$0xff]
    %v296 = vld [vmem:[#allocation8 + $0xc8] sm:$0xff]
    %v297 = vld [vmem:[#allocation8 + $0xd0] sm:$0xff]
    %v298 = vld [vmem:[#allocation8 + $0xd8] sm:$0xff]
    %v299 = vld [vmem:[#allocation8 + $0xe0] sm:$0xff]
    %v300 = vld [vmem:[#allocation8 + $0xe8] sm:$0xff]
    %v301 = vld [vmem:[#allocation8 + $0xf0] sm:$0xff]
    %v302 = vld [vmem:[#allocation8 + $0xf8] sm:$0xff]
    %v303 = vld [vmem:[%s6] sm:$0x1]
    %v305 = vperm.slane %v303, 0
    %307 = vmatpush.msra.mxu0 %v286
    %308 = vmatpush.msra.mxu0 %v285
    %309 = vmatpush.msra.mxu0 %v284
    %310 = vmatpush.msra.mxu0 %v283
    %311 = vmatpush.msra.mxu0 %v282
    %312 = vmatpush.msra.mxu0 %v281
    %313 = vmatpush.msra.mxu0 %v280
    %314 = vmatpush.msra.mxu0 %v279
    %315 = vmatpush.msra.mxu0 %v278
    %316 = vmatpush.msra.mxu0 %v277
    %317 = vmatpush.msra.mxu0 %v276
    %318 = vmatpush.msra.mxu0 %v275
    %319 = vmatpush.msra.mxu0 %v274
    %320 = vmatpush.msra.mxu0 %v273
    %321 = vmatpush.msra.mxu0 %v272
    %322 = vmatpush.msra.mxu0 %v271
    %323 = vmatmul.f32.gmra.mxu0 %v269
    %v324 = vpop.f32.mrf.mxu0
    %v325 = vadd.f32 %v305, %v324
    %326 = vdwg.mxu0
    %327 = vmatpush.msra.mxu0 %v302
    %328 = vmatpush.msra.mxu0 %v301
    %329 = vmatpush.msra.mxu0 %v300
    %330 = vmatpush.msra.mxu0 %v299
    %331 = vmatpush.msra.mxu0 %v298
    %332 = vmatpush.msra.mxu0 %v297
    %333 = vmatpush.msra.mxu0 %v296
    %334 = vmatpush.msra.mxu0 %v295
    %335 = vmatpush.msra.mxu0 %v294
    %336 = vmatpush.msra.mxu0 %v293
    %337 = vmatpush.msra.mxu0 %v292
    %338 = vmatpush.msra.mxu0 %v291
    %339 = vmatpush.msra.mxu0 %v290
    %340 = vmatpush.msra.mxu0 %v289
    %341 = vmatpush.msra.mxu0 %v288
    %342 = vmatpush.msra.mxu0 %v287
    %343 = vmatmul.f32.gmra.mxu0 %v270
    %v344 = vpop.f32.mrf.mxu0
    %v345 = vadd.f32 %v325, %v344
    %346 = vdwg.mxu0
    %v347 = vsel %vm185, %v345, 0.0
    %v348 = vrot.slane %v347, 4
    %v349 = vadd.f32 %v347, %v348
    %v350 = vrot.slane %v349, 2
    %v351 = vadd.f32 %v349, %v350
    %v352 = vrot.slane %v351, 1
    %v353 = vadd.f32 %v351, %v352
    %v354 = vmul.f32 %v353, %v206
    %v355 = vsub.f32 %v345, %v354
    %v356 = vmul.f32 %v355, %v355
    %v357 = vsel %vm185, %v356, 0.0
    %v358 = vrot.slane %v357, 4
    %v359 = vadd.f32 %v357, %v358
    %v360 = vrot.slane %v359, 2
    %v361 = vadd.f32 %v359, %v360
    %v362 = vrot.slane %v361, 1
    %v363 = vadd.f32 %v361, %v362
    %v364 = vmul.f32 %v363, %v206
    %v365 = vadd.f32 %v364, 1e-05
    %v366 = vrsqrt.pop %v365
    %v367 = vmul.f32 %v366, %v365
    %v368 = vmul.f32 %v367, %v366
    %v369 = vmul.f32 0.5, %v368
    %v370 = vsub.f32 1.5, %v369
    %v371 = vmul.f32 %v366, %v370
    %vm372 = vweird.f32 %v365
    %vm373 = vweird.f32 %v366
    %vm374 = vmor %vm372, %vm373
    %v375 = vsel %vm374, %v366, %v371
    %v376 = vmul.f32 %v355, %v375
    %v377 = vld [vmem:[%s7] sm:$0x1]
    %v379 = vperm.slane %v377, 0
    %v381 = vmul.f32 %v376, %v379
    %v382 = vld [vmem:[%s8] sm:$0x1]
    %v384 = vperm.slane %v382, 0
    %v386 = vadd.f32 %v381, %v384
    %v387 = vmax.f32 %v386, 0.0
    %v388 = vld [vmem:[#allocation10] sm:$0xff]
    %v389 = vld [vmem:[#allocation10 + $0x8] sm:$0xff]
    %v390 = vld [vmem:[#allocation10 + $0x10] sm:$0xff]
    %v391 = vld [vmem:[#allocation10 + $0x18] sm:$0xff]
    %v392 = vld [vmem:[#allocation10 + $0x20] sm:$0xff]
    %v393 = vld [vmem:[#allocation10 + $0x28] sm:$0xff]
    %v394 = vld [vmem:[#allocation10 + $0x30] sm:$0xff]
    %v395 = vld [vmem:[#allocation10 + $0x38] sm:$0xff]
    %v396 = vld [vmem:[#allocation10 + $0x40] sm:$0xff]
    %v397 = vld [vmem:[#allocation10 + $0x48] sm:$0xff]
    %v398 = vld [vmem:[#allocation10 + $0x50] sm:$0xff]
    %v399 = vld [vmem:[#allocation10 + $0x58] sm:$0xff]
    %v400 = vld [vmem:[#allocation10 + $0x60] sm:$0xff]
    %v401 = vld [vmem:[#allocation10 + $0x68] sm:$0xff]
    %v402 = vld [vmem:[#allocation10 + $0x70] sm:$0xff]
    %v403 = vld [vmem:[#allocation10 + $0x78] sm:$0xff]
    %v404 = vld [vmem:[%s10] sm:$0x1]
    %v406 = vperm.slane %v404, 0
    %408 = vmatpush.msra.mxu0 %v403
    %409 = vmatpush.msra.mxu0 %v402
    %410 = vmatpush.msra.mxu0 %v401
    %411 = vmatpush.msra.mxu0 %v400
    %412 = vmatpush.msra.mxu0 %v399
    %413 = vmatpush.msra.mxu0 %v398
    %414 = vmatpush.msra.mxu0 %v397
    %415 = vmatpush.msra.mxu0 %v396
    %416 = vmatpush.msra.mxu0 %v395
    %417 = vmatpush.msra.mxu0 %v394
    %418 = vmatpush.msra.mxu0 %v393
    %419 = vmatpush.msra.mxu0 %v392
    %420 = vmatpush.msra.mxu0 %v391
    %421 = vmatpush.msra.mxu0 %v390
    %422 = vmatpush.msra.mxu0 %v389
    %423 = vmatpush.msra.mxu0 %v388
    %424 = vmatmul.f32.gmra.mxu0 %v387
    %v425 = vpop.f32.mrf.mxu0
    %v426 = vadd.f32 %v406, %v425
    %427 = vdwg.mxu0
    %v428 = vadd.f32 %v387, %v426
    %v429 = vsel %vm185, %v428, 0.0
    %430 = vadd.xlane.f32.xlu0 %v429
    %v431 = vpop.xlane.xlu0 %430
    %v432 = vrcp.pop 128.0
    %v433 = vmul.f32 128.0, %v432
    %v434 = vsub.f32 1.0, %v433
    %v435 = vmul.f32 %v432, %v434
    %v436 = vadd.f32 %v432, %v435
    %vm437 = vweird.f32 %v432
    %v438 = vsel %vm437, %v432, %v436
    %v439 = vmul.f32 %v431, %v438
    %v440 = vsub.f32 %v428, %v439
    %v441 = vmul.f32 %v440, %v440
    %v442 = vsel %vm185, %v441, 0.0
    %443 = vadd.xlane.f32.xlu0 %v442
    %v444 = vpop.xlane.xlu0 %443
    %v445 = vmul.f32 %v444, %v438
    %v446 = vadd.f32 %v445, 1e-05
    %v447 = vrsqrt.pop %v446
    %v448 = vmul.f32 %v447, %v446
    %v449 = vmul.f32 %v448, %v447
    %v450 = vmul.f32 0.5, %v449
    %v451 = vsub.f32 1.5, %v450
    %v452 = vmul.f32 %v447, %v451
    %vm453 = vweird.f32 %v446
    %vm454 = vweird.f32 %v447
    %vm455 = vmor %vm453, %vm454
    %v456 = vsel %vm455, %v447, %v452
    %v457 = vmul.f32 %v440, %v456
    %v458 = vld [vmem:[%s11] sm:$0x1]
    %v460 = vperm.slane %v458, 0
    %v462 = vmul.f32 %v457, %v460
    %v463 = vld [vmem:[%s12] sm:$0x1]
    %v465 = vperm.slane %v463, 0
    %v467 = vadd.f32 %v462, %v465
    %v468 = vld [vmem:[%s13] sm:$0x1]
    %v470 = vperm.slane %v468, 0
    %v472 = vmul.f32 %v467, %v470
    %v473 = vsel %vm185, %v472, 0.0
    %474 = vadd.xlane.f32.xlu0 %v473
    %v475 = vpop.xlane.xlu0 %474
    %v476 = vld [vmem:[#allocation2] sm:$0x1]
    %v478 = vperm.slane %v476, 0
    %v480 = vadd.f32 %v475, %v478
    %vm481 = vcmask 3072
    %482 = vst.msk [vmem:[%s15] sm:$0xf] %vm481, %v480
    // Predicated region
    $region82: #{tpu_custom_call.1} parent=1 // pred_check
      _
    $region83: #{tpu_custom_call.1} parent=1 // pred_check_branch
      %484 = sbr.rel (0) target = $region85
    $region84: #{tpu_custom_call.1} parent=1 // pred_region
      _
    $region85: #{tpu_custom_call.1} parent=1 // pred_fallthru
      _
    // Predicated region
    $region86: #{tpu_custom_call.1} parent=1 // pred_check
      _
    $region87: #{tpu_custom_call.1} parent=1 // pred_check_branch
      %486 = sbr.rel (0) target = $region89
    $region88: #{tpu_custom_call.1} parent=1 // pred_region
      _
    $region89: #{tpu_custom_call.1} parent=1 // pred_fallthru
      _
    %487 = vsyncpa [#allocation4], 1
    %488 = vsyncpa [#allocation6], 1
    %489 = vsyncpa [#allocation9], 1

</llo_original>
